<compile_context>
chip_gen: v7x
topology: tpu7x:2x2x1
jax: 0.10.0
libtpu: 0.0.40
codegen_flags: <defaults>
</compile_context>

<pallas_src>
import functools
import math

import jax
import jax.numpy as jnp
from jax.experimental import pallas as pl
from jax.experimental.pallas import tpu as pltpu


def _round_up(n, m):
    return ((n + m - 1) // m) * m


def _gelu_exact(x):
    # PyTorch nn.GELU() default: exact erf-based GELU.
    return 0.5 * x * (1.0 + jax.lax.erf(x * (1.0 / math.sqrt(2.0))))


def _fused_feature_projection_kernel(x_ref, w1_ref, b1_ref, w2_ref, b2_ref, o_ref):
    x = x_ref[...]
    # First stage: one 128-lane-wide matmul covering both branches.
    h = jnp.dot(x, w1_ref[...], preferred_element_type=jnp.float32) + b1_ref[...]
    h = _gelu_exact(h)
    # Second stage: block-diagonal weight -> both branch outputs in one matmul.
    o = jnp.dot(h, w2_ref[...], preferred_element_type=jnp.float32) + b2_ref[...]
    o_ref[...] = o.astype(o_ref.dtype)


def _const_block_spec(block_shape, index_map):
    """BlockSpec for a grid-invariant (constant index_map) block.

    Requests single buffering so resident weights don't hold a useless second
    VMEM buffer; falls back to a plain BlockSpec if pipeline_mode / Buffered
    is unavailable in the installed Pallas.
    """
    try:
        return pl.BlockSpec(block_shape, index_map, pipeline_mode=pl.Buffered(1))
    except Exception:  # pragma: no cover - older Pallas without pipeline_mode
        return pl.BlockSpec(block_shape, index_map)


def feature_projection(x, params, *, tm=2048, split_outputs=True):
    """x: (batch, seq, input_dim) float32.

    Returns (embed, lm_head) matching the PyTorch module, or (if
    split_outputs=False) the packed lane-dense (M, Npad) slab plus (De, Dl)
    so downstream consumers can fuse the split themselves.
    """
    (w1e, b1e, w2e, b2e, w1l, b1l, w2l, b2l) = params
    B, S, Din = x.shape
    M = B * S
    Dh = w1e.shape[1]
    De = w2e.shape[1]
    Dl = w2l.shape[1]
    Dh2 = 2 * Dh
    Nout = De + Dl
    Npad = _round_up(Nout, 128)          # lane-dense output slab width

    # ---------------- row-tile selection ----------------
    # Memory/overhead-bound: pick the biggest row tile that fits the VMEM
    # budget.  tm_eff is always a multiple of 8 (sublane constraint).
    tm_eff = min(int(tm), _round_up(M, 8))
    # Keep >= 2 grid steps when the problem is big enough so v7x's two
    # TensorCores both get work via dimension_semantics=("parallel",).
    if M >= 512 and pl.cdiv(M, tm_eff) < 2:
        tm_eff = _round_up(pl.cdiv(M, 2), 8)

    def _vmem_needed(t):
        f32 = 4
        x_tile = t * _round_up(Din, 128) * f32    # x is lane-sparse -> budget 128 lanes
        h_tile = t * _round_up(Dh2, 128) * f32    # f32 intermediate / compute temps
        o_tile = t * _round_up(Npad, 128) * f32
        w_bytes = (_round_up(Din, 8) * Dh2 + _round_up(Dh2, 8) * Npad
                   + 2 * Dh2 + 2 * Npad) * f32    # resident weights + biases
        # double-buffered x/out tiles + intermediates + weights + slack
        return 2 * (x_tile + o_tile) + 2 * h_tile + w_bytes + (2 << 20)

    # Shrink the tile if it would blow the (cross-chip safe) VMEM budget.
    while _vmem_needed(tm_eff) > (48 << 20) and tm_eff > 256:
        tm_eff = max(256, _round_up(tm_eff // 2, 8))
    vmem_limit = int(min(56 << 20, max(32 << 20, _vmem_needed(tm_eff) + (8 << 20))))

    grid = (pl.cdiv(M, tm_eff),)          # ragged last tile handled by Pallas

    # No jnp.pad: avoids an extra HBM read+write pass over x and dead rows.
    x2d = x.reshape(M, Din)

    # ---- Pack weights (layout plumbing in the wrapper, not in the kernel) ----
    # First stage: concat along output axis -> (Din, 2*Dh).
    w1f = jnp.concatenate([w1e, w1l], axis=1)
    b1f = jnp.concatenate([b1e, b1l]).reshape(1, Dh2)
    # Second stage: block-diagonal -> (2*Dh, Npad), zero-padded lanes.
    w2f = jnp.zeros((Dh2, Npad), x.dtype)
    w2f = w2f.at[:Dh, :De].set(w2e)
    w2f = w2f.at[Dh:, De:Nout].set(w2l)
    b2f = jnp.zeros((1, Npad), x.dtype)
    b2f = b2f.at[0, :De].set(b2e)
    b2f = b2f.at[0, De:Nout].set(b2l)

    out = pl.pallas_call(
        _fused_feature_projection_kernel,
        out_shape=jax.ShapeDtypeStruct((M, Npad), x.dtype),
        grid_spec=pltpu.PrefetchScalarGridSpec(
            num_scalar_prefetch=0,
            grid=grid,
            in_specs=[
                pl.BlockSpec((tm_eff, Din), lambda i: (i, 0)),        # x rows (pipelined)
                _const_block_spec((Din, Dh2), lambda i: (0, 0)),      # fused W1 (resident)
                _const_block_spec((1, Dh2), lambda i: (0, 0)),        # fused b1
                _const_block_spec((Dh2, Npad), lambda i: (0, 0)),     # block-diag W2
                _const_block_spec((1, Npad), lambda i: (0, 0)),       # fused b2
            ],
            out_specs=pl.BlockSpec((tm_eff, Npad), lambda i: (i, 0)),
        ),
        compiler_params=pltpu.CompilerParams(
            dimension_semantics=("parallel",),
            vmem_limit_bytes=vmem_limit,
        ),
    )(x2d, w1f, b1f, w2f, b2f)

    if not split_outputs:
        # Lane-dense packed slab: embed in lanes [0, De), lm_head in [De, De+Dl).
        return out, (De, Dl)

    # Split under the caller's jit so XLA can fuse it with the custom call's
    # output handling instead of an extra standalone read+write pass.
    out_e = out[:, :De].reshape(B, S, De)
    out_l = out[:, De:Nout].reshape(B, S, Dl)
    return out_e, out_l


def init_params(key, input_dim, hidden_dim, embed_output_dim, lm_head_output_dim):
    """PyTorch nn.Linear default init U(-1/sqrt(fan_in), 1/sqrt(fan_in)).
    Weights stored as (in_features, out_features)."""
    def linear(k, fan_in, fan_out):
        kw, kb = jax.random.split(k)
        bound = 1.0 / math.sqrt(fan_in)
        w = jax.random.uniform(kw, (fan_in, fan_out), jnp.float32, -bound, bound)
        b = jax.random.uniform(kb, (fan_out,), jnp.float32, -bound, bound)
        return w, b

    k1, k2, k3, k4 = jax.random.split(key, 4)
    w1e, b1e = linear(k1, input_dim, hidden_dim)
    w2e, b2e = linear(k2, hidden_dim, embed_output_dim)
    w1l, b1l = linear(k3, input_dim, hidden_dim)
    w2l, b2l = linear(k4, hidden_dim, lm_head_output_dim)
    return (w1e, b1e, w2e, b2e, w1l, b1l, w2l, b2l)


def reference(x, params):
    (w1e, b1e, w2e, b2e, w1l, b1l, w2l, b2l) = params

    def mlp(w1, b1, w2, b2):
        h = jax.nn.gelu(x @ w1 + b1, approximate=False)
        return h @ w2 + b2

    return mlp(w1e, b1e, w2e, b2e), mlp(w1l, b1l, w2l, b2l)


if __name__ == "__main__":
    key = jax.random.PRNGKey(0)
    kx, kp, kx2 = jax.random.split(key, 3)

    input_dim, hidden_dim = 32, 64
    embed_output_dim, lm_head_output_dim = 48, 40
    params = init_params(kp, input_dim, hidden_dim, embed_output_dim, lm_head_output_dim)

    fp = jax.jit(functools.partial(feature_projection, tm=2048))

    # --- Test 1: small, aligned shape (matches the module's typical use) ---
    batch, seq = 2, 8
    x = jax.random.normal(kx, (batch, seq, input_dim), jnp.float32)
    out_e, out_l = fp(x, params)
    out_e, out_l = jax.block_until_ready(out_e), jax.block_until_ready(out_l)

    ref_e, ref_l = reference(x, params)
    assert out_e.shape == (batch, seq, embed_output_dim)
    assert out_l.shape == (batch, seq, lm_head_output_dim)
    assert jnp.allclose(out_e, ref_e, atol=1e-5, rtol=1e-5)
    assert jnp.allclose(out_l, ref_l, atol=1e-5, rtol=1e-5)

    # --- Test 2: ragged row count (M=300, not a multiple of 8 or of the tile) ---
    batch2, seq2 = 3, 100
    x2 = jax.random.normal(kx2, (batch2, seq2, input_dim), jnp.float32)
    out_e2, out_l2 = fp(x2, params)
    out_e2, out_l2 = jax.block_until_ready(out_e2), jax.block_until_ready(out_l2)

    ref_e2, ref_l2 = reference(x2, params)
    assert out_e2.shape == (batch2, seq2, embed_output_dim)
    assert out_l2.shape == (batch2, seq2, lm_head_output_dim)
    assert jnp.allclose(out_e2, ref_e2, atol=1e-5, rtol=1e-5)
    assert jnp.allclose(out_l2, ref_l2, atol=1e-5, rtol=1e-5)

    print("KERNEL_OK")
</pallas_src>

<mosaic_0001>
module attributes {stable_mosaic.version = 11 : i64} {
  func.func @_fused_feature_projection_kernel(%arg0: i32, %arg1: memref<16x32xf32, #tpu.memory_space<vmem>>, %arg2: memref<32x128xf32, #tpu.memory_space<vmem>>, %arg3: memref<1x128xf32, #tpu.memory_space<vmem>>, %arg4: memref<128x128xf32, #tpu.memory_space<vmem>>, %arg5: memref<1x128xf32, #tpu.memory_space<vmem>>, %arg6: memref<16x128xf32, #tpu.memory_space<vmem>>) attributes {dimension_semantics = [#tpu.dimension_semantics<parallel>], iteration_bounds = array<i64: 1>, scalar_prefetch = 0 : i64, scratch_operands = 0 : i64, tpu.core_type = #tpu.core_type<tc>, window_params = [{transform_indices = @transform_0, window_bounds = array<i64: 16, 32>}, {pipeline_mode = #tpu.pipeline_mode<synchronous>, transform_indices = @transform_1, window_bounds = array<i64: 32, 128>}, {pipeline_mode = #tpu.pipeline_mode<synchronous>, transform_indices = @transform_2, window_bounds = array<i64: 1, 128>}, {pipeline_mode = #tpu.pipeline_mode<synchronous>, transform_indices = @transform_3, window_bounds = array<i64: 128, 128>}, {pipeline_mode = #tpu.pipeline_mode<synchronous>, transform_indices = @transform_4, window_bounds = array<i64: 1, 128>}, {transform_indices = @transform_5, window_bounds = array<i64: 16, 128>}]} {
    %c0 = arith.constant 0 : index
    %c0_0 = arith.constant 0 : index
    %0 = vector.load %arg1[%c0, %c0_0] : memref<16x32xf32, #tpu.memory_space<vmem>>, vector<16x32xf32>
    %c0_1 = arith.constant 0 : index
    %c0_2 = arith.constant 0 : index
    %1 = vector.load %arg2[%c0_1, %c0_2] : memref<32x128xf32, #tpu.memory_space<vmem>>, vector<32x128xf32>
    %cst = arith.constant dense<0.000000e+00> : vector<16x128xf32>
    %2 = tpu.matmul %0, %1, %cst {dimension_numbers = #tpu.dot_dimension_numbers<[1], [0], [0], [1], [0, 0, 1, 1], [], []>} : vector<16x32xf32>, vector<32x128xf32>, vector<16x128xf32> -> vector<16x128xf32>
    %c0_3 = arith.constant 0 : index
    %c0_4 = arith.constant 0 : index
    %3 = vector.load %arg3[%c0_3, %c0_4] : memref<1x128xf32, #tpu.memory_space<vmem>>, vector<1x128xf32>
    %4 = vector.broadcast %3 : vector<1x128xf32> to vector<16x128xf32>
    %5 = arith.addf %2, %4 : vector<16x128xf32>
    %cst_5 = arith.constant 5.000000e-01 : f32
    %6 = vector.broadcast %cst_5 : f32 to vector<16x128xf32>
    %7 = arith.mulf %6, %5 : vector<16x128xf32>
    %cst_6 = arith.constant 0.707106769 : f32
    %8 = vector.broadcast %cst_6 : f32 to vector<16x128xf32>
    %9 = arith.mulf %5, %8 : vector<16x128xf32>
    %10 = math.erf %9 : vector<16x128xf32>
    %cst_7 = arith.constant 1.000000e+00 : f32
    %11 = vector.broadcast %cst_7 : f32 to vector<16x128xf32>
    %12 = arith.addf %11, %10 : vector<16x128xf32>
    %13 = arith.mulf %7, %12 : vector<16x128xf32>
    %c0_8 = arith.constant 0 : index
    %c0_9 = arith.constant 0 : index
    %14 = vector.load %arg4[%c0_8, %c0_9] : memref<128x128xf32, #tpu.memory_space<vmem>>, vector<128x128xf32>
    %cst_10 = arith.constant dense<0.000000e+00> : vector<16x128xf32>
    %15 = tpu.matmul %13, %14, %cst_10 {dimension_numbers = #tpu.dot_dimension_numbers<[1], [0], [0], [1], [0, 0, 1, 1], [], []>} : vector<16x128xf32>, vector<128x128xf32>, vector<16x128xf32> -> vector<16x128xf32>
    %c0_11 = arith.constant 0 : index
    %c0_12 = arith.constant 0 : index
    %16 = vector.load %arg5[%c0_11, %c0_12] : memref<1x128xf32, #tpu.memory_space<vmem>>, vector<1x128xf32>
    %17 = vector.broadcast %16 : vector<1x128xf32> to vector<16x128xf32>
    %18 = arith.addf %15, %17 : vector<16x128xf32>
    %c0_13 = arith.constant 0 : index
    %c0_14 = arith.constant 0 : index
    %19 = vector.load %arg6[%c0_13, %c0_14] : memref<16x128xf32, #tpu.memory_space<vmem>>, vector<16x128xf32>
    tpu.vector_store %arg6[%c0_13, %c0_14], %18 {strides = array<i32>} : memref<16x128xf32, #tpu.memory_space<vmem>>, vector<16x128xf32>,
    return
  }
  func.func @transform_0(%arg0: i32) -> (i32, i32) {
    %c0_i32 = arith.constant 0 : i32
    %c0_i32_0 = arith.constant 0 : i32
    return %arg0, %c0_i32 : i32, i32
  }
  func.func @transform_1(%arg0: i32) -> (i32, i32) {
    %c0_i32 = arith.constant 0 : i32
    %c0_i32_0 = arith.constant 0 : i32
    %c0_i32_1 = arith.constant 0 : i32
    return %c0_i32, %c0_i32_0 : i32, i32
  }
  func.func @transform_2(%arg0: i32) -> (i32, i32) {
    %c0_i32 = arith.constant 0 : i32
    %c0_i32_0 = arith.constant 0 : i32
    %c0_i32_1 = arith.constant 0 : i32
    return %c0_i32, %c0_i32_0 : i32, i32
  }
  func.func @transform_3(%arg0: i32) -> (i32, i32) {
    %c0_i32 = arith.constant 0 : i32
    %c0_i32_0 = arith.constant 0 : i32
    %c0_i32_1 = arith.constant 0 : i32
    return %c0_i32, %c0_i32_0 : i32, i32
  }
  func.func @transform_4(%arg0: i32) -> (i32, i32) {
    %c0_i32 = arith.constant 0 : i32
    %c0_i32_0 = arith.constant 0 : i32
    %c0_i32_1 = arith.constant 0 : i32
    return %c0_i32, %c0_i32_0 : i32, i32
  }
  func.func @transform_5(%arg0: i32) -> (i32, i32) {
    %c0_i32 = arith.constant 0 : i32
    %c0_i32_0 = arith.constant 0 : i32
    return %arg0, %c0_i32 : i32, i32
  }
}

</mosaic_0001>

<llo_original>
// kernel: feature_projection.1
$region0: #{feature_projection.1}
  #allocation0 [shape = 'u32[]', space=smem, size = 0x4, offset = 0x4, fixed_abs, tag = 'smem constant byte address 0x4 - core index']
  #allocation1 [shape = 'u32[144,128]{1,0:T(1,128)}', space=vmem, size = 0x12000, scoped, tag = 'internal scratch']
  %s0 = inlined_call_operand.vmem [shape: f32[16,32], index: 0, kind: input, shape index: {}]
  %s1 = inlined_call_operand.vmem [shape: f32[32,128], index: 1, kind: input, shape index: {}]
  %s2 = inlined_call_operand.vmem [shape: f32[1,128], index: 2, kind: input, shape index: {}]
  %s3 = inlined_call_operand.vmem [shape: f32[128,128], index: 3, kind: input, shape index: {}]
  %s4 = inlined_call_operand.vmem [shape: f32[1,128], index: 4, kind: input, shape index: {}]
  %s5 = inlined_call_operand.vmem [shape: f32[16,128], index: 5, kind: output, shape index: {}]
  %s6 = sld [smem:[#allocation0]]
  $region30: #{feature_projection.1} parent=0
    _
  %s8 = ssub.s32 1, %s6
  %s9 = scalar_select 0, %s8, %s6
  // Predicated region
  $region2: #{feature_projection.1} parent=0 // pred_check
    _
  $region3: #{feature_projection.1} parent=0 // pred_check_branch
    %11 = sbr.rel (0) target = $region5
  $region4: #{feature_projection.1} parent=0 // pred_region
    _
  $region5: #{feature_projection.1} parent=0 // pred_fallthru
    _
  // Predicated region
  $region6: #{feature_projection.1} parent=0 // pred_check
    _
  $region7: #{feature_projection.1} parent=0 // pred_check_branch
    %13 = sbr.rel (0) target = $region9
  $region8: #{feature_projection.1} parent=0 // pred_region
    _
  $region9: #{feature_projection.1} parent=0 // pred_fallthru
    _
  // Predicated region
  $region10: #{feature_projection.1} parent=0 // pred_check
    _
  $region11: #{feature_projection.1} parent=0 // pred_check_branch
    %15 = sbr.rel (0) target = $region13
  $region12: #{feature_projection.1} parent=0 // pred_region
    _
  $region13: #{feature_projection.1} parent=0 // pred_fallthru
    _
  // Predicated region
  $region14: #{feature_projection.1} parent=0 // pred_check
    _
  $region15: #{feature_projection.1} parent=0 // pred_check_branch
    %17 = sbr.rel (0) target = $region17
  $region16: #{feature_projection.1} parent=0 // pred_region
    _
  $region17: #{feature_projection.1} parent=0 // pred_fallthru
    _
  // Predicated region
  $region18: #{feature_projection.1} parent=0 // pred_check
    _
  $region19: #{feature_projection.1} parent=0 // pred_check_branch
    %19 = sbr.rel (0) target = $region21
  $region20: #{feature_projection.1} parent=0 // pred_region
    _
  $region21: #{feature_projection.1} parent=0 // pred_fallthru
    _
  %v20 = vld [vmem:[%s0] sm:$0xff]
  %v21 = vld [vmem:[%s0 + $0x8] sm:$0xff]
  %v22 = vld [vmem:[%s1] sm:$0xff]
  %v23 = vld [vmem:[%s1 + $0x8] sm:$0xff]
  %v24 = vld [vmem:[%s1 + $0x10] sm:$0xff]
  %v25 = vld [vmem:[%s1 + $0x18] sm:$0xff]
  %v26 = vld [vmem:[%s2] sm:$0x1]
  %v28 = vlaneseq
  %v29 = vshrl.u32 %v28, 7
  %v30 = vsub.s32 0, %v29
  %v31 = vrot.slane %v26, %v30
  %vm33 = vcmask 261120
  %v35 = vsel %vm33, %v20, 0
  %v38 = vsel %vm33, %v21, 0
  %40 = vmatprep.subr.mxu0 0.0
  %41 = vmatpush1.msra.mxu0 %v22
  %42 = vmatprep.subr.mxu0 0.0
  %43 = vmatpush1.msra.mxu0 %v23
  %44 = vmatprep.subr.mxu0 0.0
  %45 = vmatpush1.msra.mxu0 %v24
  %46 = vmatprep.subr.mxu0 0.0
  %47 = vmatpush1.msra.mxu0 %v25
  %48 = vmatprep.subr.mxu0 0.0
  %49 = vmatpush1.msra.mxu0 0.0
  %50 = vmatprep.subr.mxu0 0.0
  %51 = vmatpush1.msra.mxu0 0.0
  %52 = vmatprep.subr.mxu0 0.0
  %53 = vmatpush1.msra.mxu0 0.0
  %54 = vmatprep.subr.mxu0 0.0
  %55 = vmatpush1.msra.mxu0 0.0
  %56 = vmatprep.subr.mxu0 0.0
  %57 = vmatpush1.msra.mxu0 0.0
  %58 = vmatprep.subr.mxu0 0.0
  %59 = vmatpush1.msra.mxu0 0.0
  %60 = vmatprep.subr.mxu0 0.0
  %61 = vmatpush1.msra.mxu0 0.0
  %62 = vmatprep.subr.mxu0 0.0
  %63 = vmatpush1.msra.mxu0 0.0
  %64 = vmatprep.subr.mxu0 0.0
  %65 = vmatpush1.msra.mxu0 0.0
  %66 = vmatprep.subr.mxu0 0.0
  %67 = vmatpush1.msra.mxu0 0.0
  %68 = vmatprep.subr.mxu0 0.0
  %69 = vmatpush1.msra.mxu0 0.0
  %70 = vmatprep.subr.mxu0 0.0
  %71 = vmatpush1.msra.mxu0 0.0
  %72 = vmatprep.subr.mxu0 0.0
  %73 = vmatpush1.msra.mxu0 0.0
  %74 = vmatprep.subr.mxu0 0.0
  %75 = vmatpush1.msra.mxu0 0.0
  %76 = vmatprep.subr.mxu0 0.0
  %77 = vmatpush1.msra.mxu0 0.0
  %78 = vmatprep.subr.mxu0 0.0
  %79 = vmatpush1.msra.mxu0 0.0
  %80 = vmatprep.subr.mxu0 0.0
  %81 = vmatpush1.msra.mxu0 0.0
  %82 = vmatprep.subr.mxu0 0.0
  %83 = vmatpush1.msra.mxu0 0.0
  %84 = vmatprep.subr.mxu0 0.0
  %85 = vmatpush1.msra.mxu0 0.0
  %86 = vmatprep.subr.mxu0 0.0
  %87 = vmatpush1.msra.mxu0 0.0
  %88 = vmatprep.subr.mxu0 0.0
  %89 = vmatpush1.msra.mxu0 0.0
  %90 = vmatprep.subr.mxu0 0.0
  %91 = vmatpush1.msra.mxu0 0.0
  %92 = vmatprep.subr.mxu0 0.0
  %93 = vmatpush1.msra.mxu0 0.0
  %94 = vmatprep.subr.mxu0 0.0
  %95 = vmatpush1.msra.mxu0 0.0
  %96 = vmatprep.subr.mxu0 0.0
  %97 = vmatpush1.msra.mxu0 0.0
  %98 = vmatprep.subr.mxu0 0.0
  %99 = vmatpush1.msra.mxu0 0.0
  %100 = vmatprep.subr.mxu0 0.0
  %101 = vmatpush1.msra.mxu0 0.0
  %102 = vmatprep.subr.mxu0 0.0
  %103 = vmatpush1.msra.mxu0 0.0
  %104 = vmatprep.mubr.f32.mxu0 0.0
  %105 = vmatmul.mubr.f32.gmra.mrb[0].mxu0 %v35
  %v106 = vpop.f32.mrb[0].mxu0
  %v107 = vadd.f32 %v31, %v106
  %v108 = vpop.f32.mrb[0].mxu0
  %109 = vmatprep.mubr.f32.mxu0 0.0
  %110 = vmatmul.mubr.f32.gmra.mrb[0].mxu0 %v38
  %v111 = vpop.f32.mrb[0].mxu0
  %v112 = vadd.f32 %v31, %v111
  %v113 = vpop.f32.mrb[0].mxu0
  %114 = vdwg.mxu0
  %v115 = vmul.f32 %v107, 0.5
  %v116 = vmul.f32 %v112, 0.5
  %v117 = vmul.f32 %v107, 0.70710677
  %v118 = vmul.f32 %v112, 0.70710677
  %v119 = verf.f32.pop %v117
  %v120 = verf.f32.pop %v118
  %v121 = vadd.f32 %v119, 1.0
  %v122 = vadd.f32 %v120, 1.0
  %v123 = vmul.f32 %v115, %v121
  %v124 = vmul.f32 %v116, %v122
  %v125 = vld [vmem:[%s3] sm:$0xff]
  %v126 = vld [vmem:[%s3 + $0x8] sm:$0xff]
  %v127 = vld [vmem:[%s3 + $0x10] sm:$0xff]
  %v128 = vld [vmem:[%s3 + $0x18] sm:$0xff]
  %v129 = vld [vmem:[%s3 + $0x20] sm:$0xff]
  %v130 = vld [vmem:[%s3 + $0x28] sm:$0xff]
  %v131 = vld [vmem:[%s3 + $0x30] sm:$0xff]
  %v132 = vld [vmem:[%s3 + $0x38] sm:$0xff]
  %v133 = vld [vmem:[%s3 + $0x40] sm:$0xff]
  %v134 = vld [vmem:[%s3 + $0x48] sm:$0xff]
  %v135 = vld [vmem:[%s3 + $0x50] sm:$0xff]
  %v136 = vld [vmem:[%s3 + $0x58] sm:$0xff]
  %v137 = vld [vmem:[%s3 + $0x60] sm:$0xff]
  %v138 = vld [vmem:[%s3 + $0x68] sm:$0xff]
  %v139 = vld [vmem:[%s3 + $0x70] sm:$0xff]
  %v140 = vld [vmem:[%s3 + $0x78] sm:$0xff]
  %v141 = vld [vmem:[%s4] sm:$0x1]
  %v143 = vlaneseq
  %v144 = vshrl.u32 %v143, 7
  %v145 = vsub.s32 0, %v144
  %v146 = vrot.slane %v141, %v145
  %148 = vmatprep.subr.mxu0 0.0
  %149 = vmatpush1.msra.mxu0 %v125
  %150 = vmatprep.subr.mxu0 0.0
  %151 = vmatpush1.msra.mxu0 %v126
  %152 = vmatprep.subr.mxu0 0.0
  %153 = vmatpush1.msra.mxu0 %v127
  %154 = vmatprep.subr.mxu0 0.0
  %155 = vmatpush1.msra.mxu0 %v128
  %156 = vmatprep.subr.mxu0 0.0
  %157 = vmatpush1.msra.mxu0 %v129
  %158 = vmatprep.subr.mxu0 0.0
  %159 = vmatpush1.msra.mxu0 %v130
  %160 = vmatprep.subr.mxu0 0.0
  %161 = vmatpush1.msra.mxu0 %v131
  %162 = vmatprep.subr.mxu0 0.0
  %163 = vmatpush1.msra.mxu0 %v132
  %164 = vmatprep.subr.mxu0 0.0
  %165 = vmatpush1.msra.mxu0 %v133
  %166 = vmatprep.subr.mxu0 0.0
  %167 = vmatpush1.msra.mxu0 %v134
  %168 = vmatprep.subr.mxu0 0.0
  %169 = vmatpush1.msra.mxu0 %v135
  %170 = vmatprep.subr.mxu0 0.0
  %171 = vmatpush1.msra.mxu0 %v136
  %172 = vmatprep.subr.mxu0 0.0
  %173 = vmatpush1.msra.mxu0 %v137
  %174 = vmatprep.subr.mxu0 0.0
  %175 = vmatpush1.msra.mxu0 %v138
  %176 = vmatprep.subr.mxu0 0.0
  %177 = vmatpush1.msra.mxu0 %v139
  %178 = vmatprep.subr.mxu0 0.0
  %179 = vmatpush1.msra.mxu0 %v140
  %180 = vmatprep.subr.mxu0 0.0
  %181 = vmatpush1.msra.mxu0 0.0
  %182 = vmatprep.subr.mxu0 0.0
  %183 = vmatpush1.msra.mxu0 0.0
  %184 = vmatprep.subr.mxu0 0.0
  %185 = vmatpush1.msra.mxu0 0.0
  %186 = vmatprep.subr.mxu0 0.0
  %187 = vmatpush1.msra.mxu0 0.0
  %188 = vmatprep.subr.mxu0 0.0
  %189 = vmatpush1.msra.mxu0 0.0
  %190 = vmatprep.subr.mxu0 0.0
  %191 = vmatpush1.msra.mxu0 0.0
  %192 = vmatprep.subr.mxu0 0.0
  %193 = vmatpush1.msra.mxu0 0.0
  %194 = vmatprep.subr.mxu0 0.0
  %195 = vmatpush1.msra.mxu0 0.0
  %196 = vmatprep.subr.mxu0 0.0
  %197 = vmatpush1.msra.mxu0 0.0
  %198 = vmatprep.subr.mxu0 0.0
  %199 = vmatpush1.msra.mxu0 0.0
  %200 = vmatprep.subr.mxu0 0.0
  %201 = vmatpush1.msra.mxu0 0.0
  %202 = vmatprep.subr.mxu0 0.0
  %203 = vmatpush1.msra.mxu0 0.0
  %204 = vmatprep.subr.mxu0 0.0
  %205 = vmatpush1.msra.mxu0 0.0
  %206 = vmatprep.subr.mxu0 0.0
  %207 = vmatpush1.msra.mxu0 0.0
  %208 = vmatprep.subr.mxu0 0.0
  %209 = vmatpush1.msra.mxu0 0.0
  %210 = vmatprep.subr.mxu0 0.0
  %211 = vmatpush1.msra.mxu0 0.0
  %212 = vmatprep.mubr.f32.mxu0 0.0
  %213 = vmatmul.mubr.f32.gmra.mrb[0].mxu0 %v123
  %v214 = vpop.f32.mrb[0].mxu0
  %v215 = vadd.f32 %v146, %v214
  %v216 = vpop.f32.mrb[0].mxu0
  %217 = vmatprep.mubr.f32.mxu0 0.0
  %218 = vmatmul.mubr.f32.gmra.mrb[0].mxu0 %v124
  %v219 = vpop.f32.mrb[0].mxu0
  %v220 = vadd.f32 %v146, %v219
  %v221 = vpop.f32.mrb[0].mxu0
  %222 = vdwg.mxu0
  %223 = vst [vmem:[%s5] sm:$0xff] %v215
  %224 = vst [vmem:[%s5 + $0x8] sm:$0xff] %v220
  // Predicated region
  $region22: #{feature_projection.1} parent=0 // pred_check
    _
  $region23: #{feature_projection.1} parent=0 // pred_check_branch
    %226 = sbr.rel (0) target = $region25
  $region24: #{feature_projection.1} parent=0 // pred_region
    _
  $region25: #{feature_projection.1} parent=0 // pred_fallthru
    _
  // Predicated region
  $region26: #{feature_projection.1} parent=0 // pred_check
    _
  $region27: #{feature_projection.1} parent=0 // pred_check_branch
    %228 = sbr.rel (0) target = $region29
  $region28: #{feature_projection.1} parent=0 // pred_region
    _
  $region29: #{feature_projection.1} parent=0 // pred_fallthru
    _

</llo_original>
